<compile_context>
chip_gen: v5e
topology: v5e:2x2
jax: 0.10.0
libtpu: 0.0.40
codegen_flags: <defaults>
</compile_context>

<pallas_src>
import functools

import jax
import jax.numpy as jnp
from jax.experimental import pallas as pl
from jax.experimental.pallas import tpu as pltpu


def _full_spec(shape):
    # Whole-array block (no grid): block_shape equals the full array dims,
    # which satisfies the TPU (8,128) tiling rule for arbitrary small shapes.
    return pl.BlockSpec(shape, lambda: tuple(0 for _ in shape))


# --------------------------- fused GRU_miner kernel ---------------------------
def _gru_miner_kernel(T, Bp, B, H,
                      x_ref,        # (T*Bp, I)  timestep-major, batch padded to Bp
                      wih_ref,      # (I, 3H)    fused input weights  [r|z|n]
                      whh_ref,      # (H, 3H)    fused hidden weights [r|z|n]
                      bin_ref,      # (1, 3H)    folded biases: [b_ir+b_hr | b_iz+b_hz | b_in]
                      bhn_ref,      # (1, H)     b_hn (stays inside the r_t multiply)
                      wmlp_ref,     # (H, H)     mlp_miner weight
                      bmlp_ref,     # (1, H)     mlp_miner bias
                      wout_ref,     # (H, O)     output_layer weight
                      bout_ref,     # (1, O)     output_layer bias
                      o_ref,        # (B, O)     logits
                      proj_ref):    # (T, Bp, 3H) VMEM scratch for input projections
    H2, H3 = 2 * H, 3 * H

    # ---- Fused input projection for ALL timesteps: a single MXU pass. ----
    # Independent of h, so it sits entirely off the serial dependency chain.
    proj = (jnp.dot(x_ref[...], wih_ref[...], preferred_element_type=jnp.float32)
            + bin_ref[...])                                           # (T*Bp, 3H)
    # Stage into VMEM scratch; Bp is a multiple of 8 so every slice below is a
    # sublane-aligned store (no shuffles), and the recurrence reads proj_ref[t]
    # as a zero-cost leading-axis pointer offset.
    for t in range(T):
        proj_ref[t] = proj[t * Bp:(t + 1) * Bp, :]

    w_hh = whh_ref[...]                                               # (H, 3H)
    # Hoist the bias broadcast out of the recurrence (JAX does not CSE it).
    b_hn = jnp.broadcast_to(bhn_ref[...], (Bp, H))

    # ---- GRU recurrence (short, fixed trip count -> fully unrolled). ----
    # TODO(synk): could hold w_hh resident in MXU weight regs across steps via
    # pltpu.matmul_push_rhs / matmul_acc_lhs / matmul_pop; and/or cast the
    # recurrence matmul operands to bf16 (needs tolerance re-validation).
    h = jnp.zeros((Bp, H), jnp.float32)
    for t in range(T):
        g = jnp.dot(h, w_hh, preferred_element_type=jnp.float32)      # one (Bp,H)x(H,96) pass
        p = proj_ref[t]                                                # (Bp, 3H)
        r = jax.nn.sigmoid(p[:, 0:H] + g[:, 0:H])
        z = jax.nn.sigmoid(p[:, H:H2] + g[:, H:H2])
        n = jnp.tanh(p[:, H2:H3] + r * (g[:, H2:H3] + b_hn))
        h = (1.0 - z) * n + z * h

    # ---- support.squeeze() -> mlp_miner -> Tanh -> Dropout(eval) -> output ----
    # TODO(synk): for B == 1 the PyTorch .squeeze() also collapses the batch dim
    # ((H,) -> (n_outputs,)); math identical, only output rank differs.
    h_alphas = jnp.tanh(
        jnp.dot(h, wmlp_ref[...], preferred_element_type=jnp.float32) + bmlp_ref[...]
    )
    # Dropout(p=0.5) is the identity at inference time (eval mode).
    logits = (jnp.dot(h_alphas, wout_ref[...], preferred_element_type=jnp.float32)
              + bout_ref[...])                                         # (Bp, O)
    # Only the real (unpadded) batch rows are stored.
    o_ref[...] = logits[0:B, :]


# ------------------------- one-time parameter packing --------------------------
def pack_params(params):
    """One-time prep: fuse gate weights and fold biases (keeps per-call path lean)."""
    w_ih, w_hh, b_ih, b_hh, w_mlp, b_mlp, w_out, b_out = params
    w_ih_cat = jnp.concatenate([w_ih[0], w_ih[1], w_ih[2]], axis=1)        # (I, 3H)
    w_hh_cat = jnp.concatenate([w_hh[0], w_hh[1], w_hh[2]], axis=1)        # (H, 3H)
    b_in_cat = jnp.concatenate(
        [b_ih[0] + b_hh[0], b_ih[1] + b_hh[1], b_ih[2]], axis=1)           # (1, 3H)
    b_hn = b_hh[2]                                                         # (1, H)
    return (w_ih_cat, w_hh_cat, b_in_cat, b_hn, w_mlp, b_mlp, w_out, b_out)


# ----------------------------------- wrapper ----------------------------------
def gru_miner_forward(x, packed):
    """x: (B, T, n_inputs) float32 -> logits (B, n_outputs) float32."""
    w_ihc, w_hhc, b_inc, b_hn, w_mlp, b_mlp, w_out, b_out = packed
    B, T, I = x.shape
    H = w_hhc.shape[0]
    H3 = w_hhc.shape[1]
    O = w_out.shape[1]

    # Pad batch to a full sublane tile so every per-timestep block is aligned.
    Bp = ((B + 7) // 8) * 8
    x_pad = jnp.zeros((Bp, T, I), x.dtype).at[:B].set(x)
    # (Bp, T, I) -> (T*Bp, I): timestep-major so step t reads rows [t*Bp, (t+1)*Bp).
    x_tm = jnp.transpose(x_pad, (1, 0, 2)).reshape(T * Bp, I)

    kernel = functools.partial(_gru_miner_kernel, T, Bp, B, H)

    # NOTE: at these toy sizes everything fits in VMEM as whole-array blocks;
    # no grid / pipelining machinery on purpose (launch-bound regime).
    # TODO(synk): consider allow_input_fusion=[0] to fuse the wrapper's pad/
    # transpose/reshape into the pallas_call; and if H / n_outputs scale up,
    # tile weights with a grid + accumulator (v7x threshold is 64 MiB VMEM)
    # and add a parallel batch grid axis to use the second v7x TensorCore.
    return pl.pallas_call(
        kernel,
        out_shape=jax.ShapeDtypeStruct((B, O), jnp.float32),
        in_specs=[
            _full_spec((T * Bp, I)),
            _full_spec((I, H3)),
            _full_spec((H, H3)),
            _full_spec((1, H3)),
            _full_spec((1, H)),
            _full_spec((H, H)),
            _full_spec((1, H)),
            _full_spec((H, O)),
            _full_spec((1, O)),
        ],
        out_specs=_full_spec((B, O)),
        scratch_shapes=[pltpu.VMEM((T, Bp, H3), jnp.float32)],
    )(x_tm, w_ihc, w_hhc, b_inc, b_hn, w_mlp, b_mlp, w_out, b_out)


# ------------------------------- parameter init --------------------------------
def init_params(key, n_inputs, n_outputs, hidden_dim):
    ks = jax.random.split(key, 8)
    bg = 1.0 / float(hidden_dim) ** 0.5          # PyTorch GRU / Linear default bound
    w_ih = jax.random.uniform(ks[0], (3, n_inputs, hidden_dim), jnp.float32, -bg, bg)
    w_hh = jax.random.uniform(ks[1], (3, hidden_dim, hidden_dim), jnp.float32, -bg, bg)
    b_ih = jax.random.uniform(ks[2], (3, 1, hidden_dim), jnp.float32, -bg, bg)
    b_hh = jax.random.uniform(ks[3], (3, 1, hidden_dim), jnp.float32, -bg, bg)
    # mlp_miner: kaiming_uniform_(fan_in, nonlinearity='tanh') -> gain 5/3
    bm = (5.0 / 3.0) * (3.0 / float(hidden_dim)) ** 0.5
    w_mlp = jax.random.uniform(ks[4], (hidden_dim, hidden_dim), jnp.float32, -bm, bm)
    b_mlp = jax.random.uniform(ks[5], (1, hidden_dim), jnp.float32, -bg, bg)
    w_out = jax.random.uniform(ks[6], (hidden_dim, n_outputs), jnp.float32, -bg, bg)
    b_out = jax.random.uniform(ks[7], (1, n_outputs), jnp.float32, -bg, bg)
    return (w_ih, w_hh, b_ih, b_hh, w_mlp, b_mlp, w_out, b_out)


# ------------------------------ pure-JAX reference ------------------------------
def gru_miner_ref(x, params):
    w_ih, w_hh, b_ih, b_hh, w_mlp, b_mlp, w_out, b_out = params
    B, T, _ = x.shape
    H = w_hh.shape[1]
    h = jnp.zeros((B, H), jnp.float32)
    for t in range(T):
        x_t = x[:, t, :]
        r = jax.nn.sigmoid(x_t @ w_ih[0] + b_ih[0] + h @ w_hh[0] + b_hh[0])
        z = jax.nn.sigmoid(x_t @ w_ih[1] + b_ih[1] + h @ w_hh[1] + b_hh[1])
        n = jnp.tanh(x_t @ w_ih[2] + b_ih[2] + r * (h @ w_hh[2] + b_hh[2]))
        h = (1.0 - z) * n + z * h
    h_alphas = jnp.tanh(h @ w_mlp + b_mlp)
    return h_alphas @ w_out + b_out


if __name__ == "__main__":
    B, T, N_INPUTS = 2, 8, 16
    HIDDEN_DIM, N_OUTPUTS = 32, 4

    key = jax.random.PRNGKey(0)
    kx, kp = jax.random.split(key)
    x = jax.random.normal(kx, (B, T, N_INPUTS), jnp.float32)
    params = init_params(kp, N_INPUTS, N_OUTPUTS, HIDDEN_DIM)
    packed = pack_params(params)          # one-time weight fusion / bias folding

    fwd = jax.jit(gru_miner_forward)
    out = jax.block_until_ready(fwd(x, packed))

    ref = gru_miner_ref(x, params)
    assert out.shape == (B, N_OUTPUTS)
    assert jnp.allclose(out, ref, atol=1e-5, rtol=1e-5)

    print("KERNEL_OK")
</pallas_src>

<mosaic_0001>
module attributes {stable_mosaic.version = 11 : i64} {
  func.func @_gru_miner_kernel(%arg0: memref<64x16xf32, #tpu.memory_space<vmem>>, %arg1: memref<16x96xf32, #tpu.memory_space<vmem>>, %arg2: memref<32x96xf32, #tpu.memory_space<vmem>>, %arg3: memref<1x96xf32, #tpu.memory_space<vmem>>, %arg4: memref<1x32xf32, #tpu.memory_space<vmem>>, %arg5: memref<32x32xf32, #tpu.memory_space<vmem>>, %arg6: memref<1x32xf32, #tpu.memory_space<vmem>>, %arg7: memref<32x4xf32, #tpu.memory_space<vmem>>, %arg8: memref<1x4xf32, #tpu.memory_space<vmem>>, %arg9: memref<2x4xf32, #tpu.memory_space<vmem>>, %arg10: memref<8x8x96xf32, #tpu.memory_space<vmem>>) attributes {dimension_semantics = [], scalar_prefetch = 0 : i64, scratch_operands = 1 : i64, tpu.core_type = #tpu.core_type<tc>} {
    %c0 = arith.constant 0 : index
    %c0_0 = arith.constant 0 : index
    %0 = vector.load %arg0[%c0, %c0_0] : memref<64x16xf32, #tpu.memory_space<vmem>>, vector<64x16xf32>
    %c0_1 = arith.constant 0 : index
    %c0_2 = arith.constant 0 : index
    %1 = vector.load %arg1[%c0_1, %c0_2] : memref<16x96xf32, #tpu.memory_space<vmem>>, vector<16x96xf32>
    %cst = arith.constant dense<0.000000e+00> : vector<64x96xf32>
    %2 = tpu.matmul %0, %1, %cst {dimension_numbers = #tpu.dot_dimension_numbers<[1], [0], [0], [1], [0, 0, 1, 1], [], []>} : vector<64x16xf32>, vector<16x96xf32>, vector<64x96xf32> -> vector<64x96xf32>
    %c0_3 = arith.constant 0 : index
    %c0_4 = arith.constant 0 : index
    %3 = vector.load %arg3[%c0_3, %c0_4] : memref<1x96xf32, #tpu.memory_space<vmem>>, vector<1x96xf32>
    %4 = vector.broadcast %3 : vector<1x96xf32> to vector<64x96xf32>
    %5 = arith.addf %2, %4 : vector<64x96xf32>
    %6 = vector.extract_strided_slice %5 {offsets = [0, 0], sizes = [8, 96], strides = [1, 1]} : vector<64x96xf32> to vector<8x96xf32>
    %c0_5 = arith.constant 0 : index
    %c0_6 = arith.constant 0 : index
    %c0_7 = arith.constant 0 : index
    %7 = vector.load %arg10[%c0_5, %c0_6, %c0_7] : memref<8x8x96xf32, #tpu.memory_space<vmem>>, vector<1x8x96xf32>
    %8 = vector.shape_cast %7 : vector<1x8x96xf32> to vector<8x96xf32>
    %9 = vector.shape_cast %6 : vector<8x96xf32> to vector<1x8x96xf32>
    tpu.vector_store %arg10[%c0_5, %c0_6, %c0_7], %9 {strides = array<i32>} : memref<8x8x96xf32, #tpu.memory_space<vmem>>, vector<1x8x96xf32>,
    %10 = vector.extract_strided_slice %5 {offsets = [8, 0], sizes = [8, 96], strides = [1, 1]} : vector<64x96xf32> to vector<8x96xf32>
    %c1 = arith.constant 1 : index
    %c0_8 = arith.constant 0 : index
    %c0_9 = arith.constant 0 : index
    %11 = vector.load %arg10[%c1, %c0_8, %c0_9] : memref<8x8x96xf32, #tpu.memory_space<vmem>>, vector<1x8x96xf32>
    %12 = vector.shape_cast %11 : vector<1x8x96xf32> to vector<8x96xf32>
    %13 = vector.shape_cast %10 : vector<8x96xf32> to vector<1x8x96xf32>
    tpu.vector_store %arg10[%c1, %c0_8, %c0_9], %13 {strides = array<i32>} : memref<8x8x96xf32, #tpu.memory_space<vmem>>, vector<1x8x96xf32>,
    %14 = vector.extract_strided_slice %5 {offsets = [16, 0], sizes = [8, 96], strides = [1, 1]} : vector<64x96xf32> to vector<8x96xf32>
    %c2 = arith.constant 2 : index
    %c0_10 = arith.constant 0 : index
    %c0_11 = arith.constant 0 : index
    %15 = vector.load %arg10[%c2, %c0_10, %c0_11] : memref<8x8x96xf32, #tpu.memory_space<vmem>>, vector<1x8x96xf32>
    %16 = vector.shape_cast %15 : vector<1x8x96xf32> to vector<8x96xf32>
    %17 = vector.shape_cast %14 : vector<8x96xf32> to vector<1x8x96xf32>
    tpu.vector_store %arg10[%c2, %c0_10, %c0_11], %17 {strides = array<i32>} : memref<8x8x96xf32, #tpu.memory_space<vmem>>, vector<1x8x96xf32>,
    %18 = vector.extract_strided_slice %5 {offsets = [24, 0], sizes = [8, 96], strides = [1, 1]} : vector<64x96xf32> to vector<8x96xf32>
    %c3 = arith.constant 3 : index
    %c0_12 = arith.constant 0 : index
    %c0_13 = arith.constant 0 : index
    %19 = vector.load %arg10[%c3, %c0_12, %c0_13] : memref<8x8x96xf32, #tpu.memory_space<vmem>>, vector<1x8x96xf32>
    %20 = vector.shape_cast %19 : vector<1x8x96xf32> to vector<8x96xf32>
    %21 = vector.shape_cast %18 : vector<8x96xf32> to vector<1x8x96xf32>
    tpu.vector_store %arg10[%c3, %c0_12, %c0_13], %21 {strides = array<i32>} : memref<8x8x96xf32, #tpu.memory_space<vmem>>, vector<1x8x96xf32>,
    %22 = vector.extract_strided_slice %5 {offsets = [32, 0], sizes = [8, 96], strides = [1, 1]} : vector<64x96xf32> to vector<8x96xf32>
    %c4 = arith.constant 4 : index
    %c0_14 = arith.constant 0 : index
    %c0_15 = arith.constant 0 : index
    %23 = vector.load %arg10[%c4, %c0_14, %c0_15] : memref<8x8x96xf32, #tpu.memory_space<vmem>>, vector<1x8x96xf32>
    %24 = vector.shape_cast %23 : vector<1x8x96xf32> to vector<8x96xf32>
    %25 = vector.shape_cast %22 : vector<8x96xf32> to vector<1x8x96xf32>
    tpu.vector_store %arg10[%c4, %c0_14, %c0_15], %25 {strides = array<i32>} : memref<8x8x96xf32, #tpu.memory_space<vmem>>, vector<1x8x96xf32>,
    %26 = vector.extract_strided_slice %5 {offsets = [40, 0], sizes = [8, 96], strides = [1, 1]} : vector<64x96xf32> to vector<8x96xf32>
    %c5 = arith.constant 5 : index
    %c0_16 = arith.constant 0 : index
    %c0_17 = arith.constant 0 : index
    %27 = vector.load %arg10[%c5, %c0_16, %c0_17] : memref<8x8x96xf32, #tpu.memory_space<vmem>>, vector<1x8x96xf32>
    %28 = vector.shape_cast %27 : vector<1x8x96xf32> to vector<8x96xf32>
    %29 = vector.shape_cast %26 : vector<8x96xf32> to vector<1x8x96xf32>
    tpu.vector_store %arg10[%c5, %c0_16, %c0_17], %29 {strides = array<i32>} : memref<8x8x96xf32, #tpu.memory_space<vmem>>, vector<1x8x96xf32>,
    %30 = vector.extract_strided_slice %5 {offsets = [48, 0], sizes = [8, 96], strides = [1, 1]} : vector<64x96xf32> to vector<8x96xf32>
    %c6 = arith.constant 6 : index
    %c0_18 = arith.constant 0 : index
    %c0_19 = arith.constant 0 : index
    %31 = vector.load %arg10[%c6, %c0_18, %c0_19] : memref<8x8x96xf32, #tpu.memory_space<vmem>>, vector<1x8x96xf32>
    %32 = vector.shape_cast %31 : vector<1x8x96xf32> to vector<8x96xf32>
    %33 = vector.shape_cast %30 : vector<8x96xf32> to vector<1x8x96xf32>
    tpu.vector_store %arg10[%c6, %c0_18, %c0_19], %33 {strides = array<i32>} : memref<8x8x96xf32, #tpu.memory_space<vmem>>, vector<1x8x96xf32>,
    %34 = vector.extract_strided_slice %5 {offsets = [56, 0], sizes = [8, 96], strides = [1, 1]} : vector<64x96xf32> to vector<8x96xf32>
    %c7 = arith.constant 7 : index
    %c0_20 = arith.constant 0 : index
    %c0_21 = arith.constant 0 : index
    %35 = vector.load %arg10[%c7, %c0_20, %c0_21] : memref<8x8x96xf32, #tpu.memory_space<vmem>>, vector<1x8x96xf32>
    %36 = vector.shape_cast %35 : vector<1x8x96xf32> to vector<8x96xf32>
    %37 = vector.shape_cast %34 : vector<8x96xf32> to vector<1x8x96xf32>
    tpu.vector_store %arg10[%c7, %c0_20, %c0_21], %37 {strides = array<i32>} : memref<8x8x96xf32, #tpu.memory_space<vmem>>, vector<1x8x96xf32>,
    %c0_22 = arith.constant 0 : index
    %c0_23 = arith.constant 0 : index
    %38 = vector.load %arg2[%c0_22, %c0_23] : memref<32x96xf32, #tpu.memory_space<vmem>>, vector<32x96xf32>
    %c0_24 = arith.constant 0 : index
    %c0_25 = arith.constant 0 : index
    %39 = vector.load %arg4[%c0_24, %c0_25] : memref<1x32xf32, #tpu.memory_space<vmem>>, vector<1x32xf32>
    %40 = vector.shape_cast %39 : vector<1x32xf32> to vector<1x32xf32>
    %41 = vector.broadcast %40 : vector<1x32xf32> to vector<8x32xf32>
    %cst_26 = arith.constant 0.000000e+00 : f32
    %42 = vector.broadcast %cst_26 : f32 to vector<8x32xf32>
    %cst_27 = arith.constant dense<0.000000e+00> : vector<8x96xf32>
    %43 = tpu.matmul %42, %38, %cst_27 {dimension_numbers = #tpu.dot_dimension_numbers<[1], [0], [0], [1], [0, 0, 1, 1], [], []>} : vector<8x32xf32>, vector<32x96xf32>, vector<8x96xf32> -> vector<8x96xf32>
    %c0_28 = arith.constant 0 : index
    %c0_29 = arith.constant 0 : index
    %c0_30 = arith.constant 0 : index
    %44 = vector.load %arg10[%c0_28, %c0_29, %c0_30] : memref<8x8x96xf32, #tpu.memory_space<vmem>>, vector<1x8x96xf32>
    %45 = vector.shape_cast %44 : vector<1x8x96xf32> to vector<8x96xf32>
    %46 = vector.extract_strided_slice %45 {offsets = [0, 0], sizes = [8, 32], strides = [1, 1]} : vector<8x96xf32> to vector<8x32xf32>
    %47 = vector.extract_strided_slice %43 {offsets = [0, 0], sizes = [8, 32], strides = [1, 1]} : vector<8x96xf32> to vector<8x32xf32>
    %48 = arith.addf %46, %47 : vector<8x32xf32>
    %49 = arith.negf %48 : vector<8x32xf32>
    %50 = math.exp %49 : vector<8x32xf32>
    %cst_31 = arith.constant 1.000000e+00 : f32
    %51 = vector.broadcast %cst_31 : f32 to vector<8x32xf32>
    %52 = arith.addf %51, %50 : vector<8x32xf32>
    %53 = arith.divf %51, %52 : vector<8x32xf32>
    %54 = vector.extract_strided_slice %45 {offsets = [0, 32], sizes = [8, 32], strides = [1, 1]} : vector<8x96xf32> to vector<8x32xf32>
    %55 = vector.extract_strided_slice %43 {offsets = [0, 32], sizes = [8, 32], strides = [1, 1]} : vector<8x96xf32> to vector<8x32xf32>
    %56 = arith.addf %54, %55 : vector<8x32xf32>
    %57 = arith.negf %56 : vector<8x32xf32>
    %58 = math.exp %57 : vector<8x32xf32>
    %cst_32 = arith.constant 1.000000e+00 : f32
    %59 = vector.broadcast %cst_32 : f32 to vector<8x32xf32>
    %60 = arith.addf %59, %58 : vector<8x32xf32>
    %61 = arith.divf %59, %60 : vector<8x32xf32>
    %62 = vector.extract_strided_slice %45 {offsets = [0, 64], sizes = [8, 32], strides = [1, 1]} : vector<8x96xf32> to vector<8x32xf32>
    %63 = vector.extract_strided_slice %43 {offsets = [0, 64], sizes = [8, 32], strides = [1, 1]} : vector<8x96xf32> to vector<8x32xf32>
    %64 = arith.addf %63, %41 : vector<8x32xf32>
    %65 = arith.mulf %53, %64 : vector<8x32xf32>
    %66 = arith.addf %62, %65 : vector<8x32xf32>
    %67 = math.tanh %66 : vector<8x32xf32>
    %cst_33 = arith.constant 1.000000e+00 : f32
    %68 = vector.broadcast %cst_33 : f32 to vector<8x32xf32>
    %69 = arith.subf %68, %61 : vector<8x32xf32>
    %70 = arith.mulf %69, %67 : vector<8x32xf32>
    %71 = arith.mulf %61, %42 : vector<8x32xf32>
    %72 = arith.addf %70, %71 : vector<8x32xf32>
    %cst_34 = arith.constant dense<0.000000e+00> : vector<8x96xf32>
    %73 = tpu.matmul %72, %38, %cst_34 {dimension_numbers = #tpu.dot_dimension_numbers<[1], [0], [0], [1], [0, 0, 1, 1], [], []>} : vector<8x32xf32>, vector<32x96xf32>, vector<8x96xf32> -> vector<8x96xf32>
    %c1_35 = arith.constant 1 : index
    %c0_36 = arith.constant 0 : index
    %c0_37 = arith.constant 0 : index
    %74 = vector.load %arg10[%c1_35, %c0_36, %c0_37] : memref<8x8x96xf32, #tpu.memory_space<vmem>>, vector<1x8x96xf32>
    %75 = vector.shape_cast %74 : vector<1x8x96xf32> to vector<8x96xf32>
    %76 = vector.extract_strided_slice %75 {offsets = [0, 0], sizes = [8, 32], strides = [1, 1]} : vector<8x96xf32> to vector<8x32xf32>
    %77 = vector.extract_strided_slice %73 {offsets = [0, 0], sizes = [8, 32], strides = [1, 1]} : vector<8x96xf32> to vector<8x32xf32>
    %78 = arith.addf %76, %77 : vector<8x32xf32>
    %79 = arith.negf %78 : vector<8x32xf32>
    %80 = math.exp %79 : vector<8x32xf32>
    %cst_38 = arith.constant 1.000000e+00 : f32
    %81 = vector.broadcast %cst_38 : f32 to vector<8x32xf32>
    %82 = arith.addf %81, %80 : vector<8x32xf32>
    %83 = arith.divf %81, %82 : vector<8x32xf32>
    %84 = vector.extract_strided_slice %75 {offsets = [0, 32], sizes = [8, 32], strides = [1, 1]} : vector<8x96xf32> to vector<8x32xf32>
    %85 = vector.extract_strided_slice %73 {offsets = [0, 32], sizes = [8, 32], strides = [1, 1]} : vector<8x96xf32> to vector<8x32xf32>
    %86 = arith.addf %84, %85 : vector<8x32xf32>
    %87 = arith.negf %86 : vector<8x32xf32>
    %88 = math.exp %87 : vector<8x32xf32>
    %cst_39 = arith.constant 1.000000e+00 : f32
    %89 = vector.broadcast %cst_39 : f32 to vector<8x32xf32>
    %90 = arith.addf %89, %88 : vector<8x32xf32>
    %91 = arith.divf %89, %90 : vector<8x32xf32>
    %92 = vector.extract_strided_slice %75 {offsets = [0, 64], sizes = [8, 32], strides = [1, 1]} : vector<8x96xf32> to vector<8x32xf32>
    %93 = vector.extract_strided_slice %73 {offsets = [0, 64], sizes = [8, 32], strides = [1, 1]} : vector<8x96xf32> to vector<8x32xf32>
    %94 = arith.addf %93, %41 : vector<8x32xf32>
    %95 = arith.mulf %83, %94 : vector<8x32xf32>
    %96 = arith.addf %92, %95 : vector<8x32xf32>
    %97 = math.tanh %96 : vector<8x32xf32>
    %cst_40 = arith.constant 1.000000e+00 : f32
    %98 = vector.broadcast %cst_40 : f32 to vector<8x32xf32>
    %99 = arith.subf %98, %91 : vector<8x32xf32>
    %100 = arith.mulf %99, %97 : vector<8x32xf32>
    %101 = arith.mulf %91, %72 : vector<8x32xf32>
    %102 = arith.addf %100, %101 : vector<8x32xf32>
    %cst_41 = arith.constant dense<0.000000e+00> : vector<8x96xf32>
    %103 = tpu.matmul %102, %38, %cst_41 {dimension_numbers = #tpu.dot_dimension_numbers<[1], [0], [0], [1], [0, 0, 1, 1], [], []>} : vector<8x32xf32>, vector<32x96xf32>, vector<8x96xf32> -> vector<8x96xf32>
    %c2_42 = arith.constant 2 : index
    %c0_43 = arith.constant 0 : index
    %c0_44 = arith.constant 0 : index
    %104 = vector.load %arg10[%c2_42, %c0_43, %c0_44] : memref<8x8x96xf32, #tpu.memory_space<vmem>>, vector<1x8x96xf32>
    %105 = vector.shape_cast %104 : vector<1x8x96xf32> to vector<8x96xf32>
    %106 = vector.extract_strided_slice %105 {offsets = [0, 0], sizes = [8, 32], strides = [1, 1]} : vector<8x96xf32> to vector<8x32xf32>
    %107 = vector.extract_strided_slice %103 {offsets = [0, 0], sizes = [8, 32], strides = [1, 1]} : vector<8x96xf32> to vector<8x32xf32>
    %108 = arith.addf %106, %107 : vector<8x32xf32>
    %109 = arith.negf %108 : vector<8x32xf32>
    %110 = math.exp %109 : vector<8x32xf32>
    %cst_45 = arith.constant 1.000000e+00 : f32
    %111 = vector.broadcast %cst_45 : f32 to vector<8x32xf32>
    %112 = arith.addf %111, %110 : vector<8x32xf32>
    %113 = arith.divf %111, %112 : vector<8x32xf32>
    %114 = vector.extract_strided_slice %105 {offsets = [0, 32], sizes = [8, 32], strides = [1, 1]} : vector<8x96xf32> to vector<8x32xf32>
    %115 = vector.extract_strided_slice %103 {offsets = [0, 32], sizes = [8, 32], strides = [1, 1]} : vector<8x96xf32> to vector<8x32xf32>
    %116 = arith.addf %114, %115 : vector<8x32xf32>
    %117 = arith.negf %116 : vector<8x32xf32>
    %118 = math.exp %117 : vector<8x32xf32>
    %cst_46 = arith.constant 1.000000e+00 : f32
    %119 = vector.broadcast %cst_46 : f32 to vector<8x32xf32>
    %120 = arith.addf %119, %118 : vector<8x32xf32>
    %121 = arith.divf %119, %120 : vector<8x32xf32>
    %122 = vector.extract_strided_slice %105 {offsets = [0, 64], sizes = [8, 32], strides = [1, 1]} : vector<8x96xf32> to vector<8x32xf32>
    %123 = vector.extract_strided_slice %103 {offsets = [0, 64], sizes = [8, 32], strides = [1, 1]} : vector<8x96xf32> to vector<8x32xf32>
    %124 = arith.addf %123, %41 : vector<8x32xf32>
    %125 = arith.mulf %113, %124 : vector<8x32xf32>
    %126 = arith.addf %122, %125 : vector<8x32xf32>
    %127 = math.tanh %126 : vector<8x32xf32>
    %cst_47 = arith.constant 1.000000e+00 : f32
    %128 = vector.broadcast %cst_47 : f32 to vector<8x32xf32>
    %129 = arith.subf %128, %121 : vector<8x32xf32>
    %130 = arith.mulf %129, %127 : vector<8x32xf32>
    %131 = arith.mulf %121, %102 : vector<8x32xf32>
    %132 = arith.addf %130, %131 : vector<8x32xf32>
    %cst_48 = arith.constant dense<0.000000e+00> : vector<8x96xf32>
    %133 = tpu.matmul %132, %38, %cst_48 {dimension_numbers = #tpu.dot_dimension_numbers<[1], [0], [0], [1], [0, 0, 1, 1], [], []>} : vector<8x32xf32>, vector<32x96xf32>, vector<8x96xf32> -> vector<8x96xf32>
    %c3_49 = arith.constant 3 : index
    %c0_50 = arith.constant 0 : index
    %c0_51 = arith.constant 0 : index
    %134 = vector.load %arg10[%c3_49, %c0_50, %c0_51] : memref<8x8x96xf32, #tpu.memory_space<vmem>>, vector<1x8x96xf32>
    %135 = vector.shape_cast %134 : vector<1x8x96xf32> to vector<8x96xf32>
    %136 = vector.extract_strided_slice %135 {offsets = [0, 0], sizes = [8, 32], strides = [1, 1]} : vector<8x96xf32> to vector<8x32xf32>
    %137 = vector.extract_strided_slice %133 {offsets = [0, 0], sizes = [8, 32], strides = [1, 1]} : vector<8x96xf32> to vector<8x32xf32>
    %138 = arith.addf %136, %137 : vector<8x32xf32>
    %139 = arith.negf %138 : vector<8x32xf32>
    %140 = math.exp %139 : vector<8x32xf32>
    %cst_52 = arith.constant 1.000000e+00 : f32
    %141 = vector.broadcast %cst_52 : f32 to vector<8x32xf32>
    %142 = arith.addf %141, %140 : vector<8x32xf32>
    %143 = arith.divf %141, %142 : vector<8x32xf32>
    %144 = vector.extract_strided_slice %135 {offsets = [0, 32], sizes = [8, 32], strides = [1, 1]} : vector<8x96xf32> to vector<8x32xf32>
    %145 = vector.extract_strided_slice %133 {offsets = [0, 32], sizes = [8, 32], strides = [1, 1]} : vector<8x96xf32> to vector<8x32xf32>
    %146 = arith.addf %144, %145 : vector<8x32xf32>
    %147 = arith.negf %146 : vector<8x32xf32>
    %148 = math.exp %147 : vector<8x32xf32>
    %cst_53 = arith.constant 1.000000e+00 : f32
    %149 = vector.broadcast %cst_53 : f32 to vector<8x32xf32>
    %150 = arith.addf %149, %148 : vector<8x32xf32>
    %151 = arith.divf %149, %150 : vector<8x32xf32>
    %152 = vector.extract_strided_slice %135 {offsets = [0, 64], sizes = [8, 32], strides = [1, 1]} : vector<8x96xf32> to vector<8x32xf32>
    %153 = vector.extract_strided_slice %133 {offsets = [0, 64], sizes = [8, 32], strides = [1, 1]} : vector<8x96xf32> to vector<8x32xf32>
    %154 = arith.addf %153, %41 : vector<8x32xf32>
    %155 = arith.mulf %143, %154 : vector<8x32xf32>
    %156 = arith.addf %152, %155 : vector<8x32xf32>
    %157 = math.tanh %156 : vector<8x32xf32>
    %cst_54 = arith.constant 1.000000e+00 : f32
    %158 = vector.broadcast %cst_54 : f32 to vector<8x32xf32>
    %159 = arith.subf %158, %151 : vector<8x32xf32>
    %160 = arith.mulf %159, %157 : vector<8x32xf32>
    %161 = arith.mulf %151, %132 : vector<8x32xf32>
    %162 = arith.addf %160, %161 : vector<8x32xf32>
    %cst_55 = arith.constant dense<0.000000e+00> : vector<8x96xf32>
    %163 = tpu.matmul %162, %38, %cst_55 {dimension_numbers = #tpu.dot_dimension_numbers<[1], [0], [0], [1], [0, 0, 1, 1], [], []>} : vector<8x32xf32>, vector<32x96xf32>, vector<8x96xf32> -> vector<8x96xf32>
    %c4_56 = arith.constant 4 : index
    %c0_57 = arith.constant 0 : index
    %c0_58 = arith.constant 0 : index
    %164 = vector.load %arg10[%c4_56, %c0_57, %c0_58] : memref<8x8x96xf32, #tpu.memory_space<vmem>>, vector<1x8x96xf32>
    %165 = vector.shape_cast %164 : vector<1x8x96xf32> to vector<8x96xf32>
    %166 = vector.extract_strided_slice %165 {offsets = [0, 0], sizes = [8, 32], strides = [1, 1]} : vector<8x96xf32> to vector<8x32xf32>
    %167 = vector.extract_strided_slice %163 {offsets = [0, 0], sizes = [8, 32], strides = [1, 1]} : vector<8x96xf32> to vector<8x32xf32>
    %168 = arith.addf %166, %167 : vector<8x32xf32>
    %169 = arith.negf %168 : vector<8x32xf32>
    %170 = math.exp %169 : vector<8x32xf32>
    %cst_59 = arith.constant 1.000000e+00 : f32
    %171 = vector.broadcast %cst_59 : f32 to vector<8x32xf32>
    %172 = arith.addf %171, %170 : vector<8x32xf32>
    %173 = arith.divf %171, %172 : vector<8x32xf32>
    %174 = vector.extract_strided_slice %165 {offsets = [0, 32], sizes = [8, 32], strides = [1, 1]} : vector<8x96xf32> to vector<8x32xf32>
    %175 = vector.extract_strided_slice %163 {offsets = [0, 32], sizes = [8, 32], strides = [1, 1]} : vector<8x96xf32> to vector<8x32xf32>
    %176 = arith.addf %174, %175 : vector<8x32xf32>
    %177 = arith.negf %176 : vector<8x32xf32>
    %178 = math.exp %177 : vector<8x32xf32>
    %cst_60 = arith.constant 1.000000e+00 : f32
    %179 = vector.broadcast %cst_60 : f32 to vector<8x32xf32>
    %180 = arith.addf %179, %178 : vector<8x32xf32>
    %181 = arith.divf %179, %180 : vector<8x32xf32>
    %182 = vector.extract_strided_slice %165 {offsets = [0, 64], sizes = [8, 32], strides = [1, 1]} : vector<8x96xf32> to vector<8x32xf32>
    %183 = vector.extract_strided_slice %163 {offsets = [0, 64], sizes = [8, 32], strides = [1, 1]} : vector<8x96xf32> to vector<8x32xf32>
    %184 = arith.addf %183, %41 : vector<8x32xf32>
    %185 = arith.mulf %173, %184 : vector<8x32xf32>
    %186 = arith.addf %182, %185 : vector<8x32xf32>
    %187 = math.tanh %186 : vector<8x32xf32>
    %cst_61 = arith.constant 1.000000e+00 : f32
    %188 = vector.broadcast %cst_61 : f32 to vector<8x32xf32>
    %189 = arith.subf %188, %181 : vector<8x32xf32>
    %190 = arith.mulf %189, %187 : vector<8x32xf32>
    %191 = arith.mulf %181, %162 : vector<8x32xf32>
    %192 = arith.addf %190, %191 : vector<8x32xf32>
    %cst_62 = arith.constant dense<0.000000e+00> : vector<8x96xf32>
    %193 = tpu.matmul %192, %38, %cst_62 {dimension_numbers = #tpu.dot_dimension_numbers<[1], [0], [0], [1], [0, 0, 1, 1], [], []>} : vector<8x32xf32>, vector<32x96xf32>, vector<8x96xf32> -> vector<8x96xf32>
    %c5_63 = arith.constant 5 : index
    %c0_64 = arith.constant 0 : index
    %c0_65 = arith.constant 0 : index
    %194 = vector.load %arg10[%c5_63, %c0_64, %c0_65] : memref<8x8x96xf32, #tpu.memory_space<vmem>>, vector<1x8x96xf32>
    %195 = vector.shape_cast %194 : vector<1x8x96xf32> to vector<8x96xf32>
    %196 = vector.extract_strided_slice %195 {offsets = [0, 0], sizes = [8, 32], strides = [1, 1]} : vector<8x96xf32> to vector<8x32xf32>
    %197 = vector.extract_strided_slice %193 {offsets = [0, 0], sizes = [8, 32], strides = [1, 1]} : vector<8x96xf32> to vector<8x32xf32>
    %198 = arith.addf %196, %197 : vector<8x32xf32>
    %199 = arith.negf %198 : vector<8x32xf32>
    %200 = math.exp %199 : vector<8x32xf32>
    %cst_66 = arith.constant 1.000000e+00 : f32
    %201 = vector.broadcast %cst_66 : f32 to vector<8x32xf32>
    %202 = arith.addf %201, %200 : vector<8x32xf32>
    %203 = arith.divf %201, %202 : vector<8x32xf32>
    %204 = vector.extract_strided_slice %195 {offsets = [0, 32], sizes = [8, 32], strides = [1, 1]} : vector<8x96xf32> to vector<8x32xf32>
    %205 = vector.extract_strided_slice %193 {offsets = [0, 32], sizes = [8, 32], strides = [1, 1]} : vector<8x96xf32> to vector<8x32xf32>
    %206 = arith.addf %204, %205 : vector<8x32xf32>
    %207 = arith.negf %206 : vector<8x32xf32>
    %208 = math.exp %207 : vector<8x32xf32>
    %cst_67 = arith.constant 1.000000e+00 : f32
    %209 = vector.broadcast %cst_67 : f32 to vector<8x32xf32>
    %210 = arith.addf %209, %208 : vector<8x32xf32>
    %211 = arith.divf %209, %210 : vector<8x32xf32>
    %212 = vector.extract_strided_slice %195 {offsets = [0, 64], sizes = [8, 32], strides = [1, 1]} : vector<8x96xf32> to vector<8x32xf32>
    %213 = vector.extract_strided_slice %193 {offsets = [0, 64], sizes = [8, 32], strides = [1, 1]} : vector<8x96xf32> to vector<8x32xf32>
    %214 = arith.addf %213, %41 : vector<8x32xf32>
    %215 = arith.mulf %203, %214 : vector<8x32xf32>
    %216 = arith.addf %212, %215 : vector<8x32xf32>
    %217 = math.tanh %216 : vector<8x32xf32>
    %cst_68 = arith.constant 1.000000e+00 : f32
    %218 = vector.broadcast %cst_68 : f32 to vector<8x32xf32>
    %219 = arith.subf %218, %211 : vector<8x32xf32>
    %220 = arith.mulf %219, %217 : vector<8x32xf32>
    %221 = arith.mulf %211, %192 : vector<8x32xf32>
    %222 = arith.addf %220, %221 : vector<8x32xf32>
    %cst_69 = arith.constant dense<0.000000e+00> : vector<8x96xf32>
    %223 = tpu.matmul %222, %38, %cst_69 {dimension_numbers = #tpu.dot_dimension_numbers<[1], [0], [0], [1], [0, 0, 1, 1], [], []>} : vector<8x32xf32>, vector<32x96xf32>, vector<8x96xf32> -> vector<8x96xf32>
    %c6_70 = arith.constant 6 : index
    %c0_71 = arith.constant 0 : index
    %c0_72 = arith.constant 0 : index
    %224 = vector.load %arg10[%c6_70, %c0_71, %c0_72] : memref<8x8x96xf32, #tpu.memory_space<vmem>>, vector<1x8x96xf32>
    %225 = vector.shape_cast %224 : vector<1x8x96xf32> to vector<8x96xf32>
    %226 = vector.extract_strided_slice %225 {offsets = [0, 0], sizes = [8, 32], strides = [1, 1]} : vector<8x96xf32> to vector<8x32xf32>
    %227 = vector.extract_strided_slice %223 {offsets = [0, 0], sizes = [8, 32], strides = [1, 1]} : vector<8x96xf32> to vector<8x32xf32>
    %228 = arith.addf %226, %227 : vector<8x32xf32>
    %229 = arith.negf %228 : vector<8x32xf32>
    %230 = math.exp %229 : vector<8x32xf32>
    %cst_73 = arith.constant 1.000000e+00 : f32
    %231 = vector.broadcast %cst_73 : f32 to vector<8x32xf32>
    %232 = arith.addf %231, %230 : vector<8x32xf32>
    %233 = arith.divf %231, %232 : vector<8x32xf32>
    %234 = vector.extract_strided_slice %225 {offsets = [0, 32], sizes = [8, 32], strides = [1, 1]} : vector<8x96xf32> to vector<8x32xf32>
    %235 = vector.extract_strided_slice %223 {offsets = [0, 32], sizes = [8, 32], strides = [1, 1]} : vector<8x96xf32> to vector<8x32xf32>
    %236 = arith.addf %234, %235 : vector<8x32xf32>
    %237 = arith.negf %236 : vector<8x32xf32>
    %238 = math.exp %237 : vector<8x32xf32>
    %cst_74 = arith.constant 1.000000e+00 : f32
    %239 = vector.broadcast %cst_74 : f32 to vector<8x32xf32>
    %240 = arith.addf %239, %238 : vector<8x32xf32>
    %241 = arith.divf %239, %240 : vector<8x32xf32>
    %242 = vector.extract_strided_slice %225 {offsets = [0, 64], sizes = [8, 32], strides = [1, 1]} : vector<8x96xf32> to vector<8x32xf32>
    %243 = vector.extract_strided_slice %223 {offsets = [0, 64], sizes = [8, 32], strides = [1, 1]} : vector<8x96xf32> to vector<8x32xf32>
    %244 = arith.addf %243, %41 : vector<8x32xf32>
    %245 = arith.mulf %233, %244 : vector<8x32xf32>
    %246 = arith.addf %242, %245 : vector<8x32xf32>
    %247 = math.tanh %246 : vector<8x32xf32>
    %cst_75 = arith.constant 1.000000e+00 : f32
    %248 = vector.broadcast %cst_75 : f32 to vector<8x32xf32>
    %249 = arith.subf %248, %241 : vector<8x32xf32>
    %250 = arith.mulf %249, %247 : vector<8x32xf32>
    %251 = arith.mulf %241, %222 : vector<8x32xf32>
    %252 = arith.addf %250, %251 : vector<8x32xf32>
    %cst_76 = arith.constant dense<0.000000e+00> : vector<8x96xf32>
    %253 = tpu.matmul %252, %38, %cst_76 {dimension_numbers = #tpu.dot_dimension_numbers<[1], [0], [0], [1], [0, 0, 1, 1], [], []>} : vector<8x32xf32>, vector<32x96xf32>, vector<8x96xf32> -> vector<8x96xf32>
    %c7_77 = arith.constant 7 : index
    %c0_78 = arith.constant 0 : index
    %c0_79 = arith.constant 0 : index
    %254 = vector.load %arg10[%c7_77, %c0_78, %c0_79] : memref<8x8x96xf32, #tpu.memory_space<vmem>>, vector<1x8x96xf32>
    %255 = vector.shape_cast %254 : vector<1x8x96xf32> to vector<8x96xf32>
    %256 = vector.extract_strided_slice %255 {offsets = [0, 0], sizes = [8, 32], strides = [1, 1]} : vector<8x96xf32> to vector<8x32xf32>
    %257 = vector.extract_strided_slice %253 {offsets = [0, 0], sizes = [8, 32], strides = [1, 1]} : vector<8x96xf32> to vector<8x32xf32>
    %258 = arith.addf %256, %257 : vector<8x32xf32>
    %259 = arith.negf %258 : vector<8x32xf32>
    %260 = math.exp %259 : vector<8x32xf32>
    %cst_80 = arith.constant 1.000000e+00 : f32
    %261 = vector.broadcast %cst_80 : f32 to vector<8x32xf32>
    %262 = arith.addf %261, %260 : vector<8x32xf32>
    %263 = arith.divf %261, %262 : vector<8x32xf32>
    %264 = vector.extract_strided_slice %255 {offsets = [0, 32], sizes = [8, 32], strides = [1, 1]} : vector<8x96xf32> to vector<8x32xf32>
    %265 = vector.extract_strided_slice %253 {offsets = [0, 32], sizes = [8, 32], strides = [1, 1]} : vector<8x96xf32> to vector<8x32xf32>
    %266 = arith.addf %264, %265 : vector<8x32xf32>
    %267 = arith.negf %266 : vector<8x32xf32>
    %268 = math.exp %267 : vector<8x32xf32>
    %cst_81 = arith.constant 1.000000e+00 : f32
    %269 = vector.broadcast %cst_81 : f32 to vector<8x32xf32>
    %270 = arith.addf %269, %268 : vector<8x32xf32>
    %271 = arith.divf %269, %270 : vector<8x32xf32>
    %272 = vector.extract_strided_slice %255 {offsets = [0, 64], sizes = [8, 32], strides = [1, 1]} : vector<8x96xf32> to vector<8x32xf32>
    %273 = vector.extract_strided_slice %253 {offsets = [0, 64], sizes = [8, 32], strides = [1, 1]} : vector<8x96xf32> to vector<8x32xf32>
    %274 = arith.addf %273, %41 : vector<8x32xf32>
    %275 = arith.mulf %263, %274 : vector<8x32xf32>
    %276 = arith.addf %272, %275 : vector<8x32xf32>
    %277 = math.tanh %276 : vector<8x32xf32>
    %cst_82 = arith.constant 1.000000e+00 : f32
    %278 = vector.broadcast %cst_82 : f32 to vector<8x32xf32>
    %279 = arith.subf %278, %271 : vector<8x32xf32>
    %280 = arith.mulf %279, %277 : vector<8x32xf32>
    %281 = arith.mulf %271, %252 : vector<8x32xf32>
    %282 = arith.addf %280, %281 : vector<8x32xf32>
    %c0_83 = arith.constant 0 : index
    %c0_84 = arith.constant 0 : index
    %283 = vector.load %arg5[%c0_83, %c0_84] : memref<32x32xf32, #tpu.memory_space<vmem>>, vector<32x32xf32>
    %cst_85 = arith.constant dense<0.000000e+00> : vector<8x32xf32>
    %284 = tpu.matmul %282, %283, %cst_85 {dimension_numbers = #tpu.dot_dimension_numbers<[1], [0], [0], [1], [0, 0, 1, 1], [], []>} : vector<8x32xf32>, vector<32x32xf32>, vector<8x32xf32> -> vector<8x32xf32>
    %c0_86 = arith.constant 0 : index
    %c0_87 = arith.constant 0 : index
    %285 = vector.load %arg6[%c0_86, %c0_87] : memref<1x32xf32, #tpu.memory_space<vmem>>, vector<1x32xf32>
    %286 = vector.broadcast %285 : vector<1x32xf32> to vector<8x32xf32>
    %287 = arith.addf %284, %286 : vector<8x32xf32>
    %288 = math.tanh %287 : vector<8x32xf32>
    %c0_88 = arith.constant 0 : index
    %c0_89 = arith.constant 0 : index
    %289 = vector.load %arg7[%c0_88, %c0_89] : memref<32x4xf32, #tpu.memory_space<vmem>>, vector<32x4xf32>
    %cst_90 = arith.constant dense<0.000000e+00> : vector<8x4xf32>
    %290 = tpu.matmul %288, %289, %cst_90 {dimension_numbers = #tpu.dot_dimension_numbers<[1], [0], [0], [1], [0, 0, 1, 1], [], []>} : vector<8x32xf32>, vector<32x4xf32>, vector<8x4xf32> -> vector<8x4xf32>
    %c0_91 = arith.constant 0 : index
    %c0_92 = arith.constant 0 : index
    %291 = vector.load %arg8[%c0_91, %c0_92] : memref<1x4xf32, #tpu.memory_space<vmem>>, vector<1x4xf32>
    %292 = vector.broadcast %291 : vector<1x4xf32> to vector<8x4xf32>
    %293 = arith.addf %290, %292 : vector<8x4xf32>
    %294 = vector.extract_strided_slice %293 {offsets = [0, 0], sizes = [2, 4], strides = [1, 1]} : vector<8x4xf32> to vector<2x4xf32>
    %c0_93 = arith.constant 0 : index
    %c0_94 = arith.constant 0 : index
    %295 = vector.load %arg9[%c0_93, %c0_94] : memref<2x4xf32, #tpu.memory_space<vmem>>, vector<2x4xf32>
    tpu.vector_store %arg9[%c0_93, %c0_94], %294 {strides = array<i32>} : memref<2x4xf32, #tpu.memory_space<vmem>>, vector<2x4xf32>,
    return
  }
}

</mosaic_0001>

<llo_original>
// kernel: gru_miner_forward.1
$region0: #{gru_miner_forward.1}
  #allocation0 [shape = 'u32[]', space=smem, size = 0x4, offset = 0x4, fixed_abs, tag = 'smem constant byte address 0x4 - core index']
  #allocation1 [shape = 'u32[72,128]{1,0:T(1,128)}', space=vmem, size = 0x9000, scoped, tag = 'internal scratch']
  #allocation2 [shape = 'f32[8,8,96]{2,1,0:T(8,128)}', space=vmem, size = 0x8000, scoped, tag = 'scratch operand']
  %s0 = inlined_call_operand.vmem [shape: f32[64,16], index: 0, kind: input, shape index: {}]
  %s1 = inlined_call_operand.vmem [shape: f32[16,96], index: 1, kind: input, shape index: {}]
  %s2 = inlined_call_operand.vmem [shape: f32[32,96], index: 2, kind: input, shape index: {}]
  %s3 = inlined_call_operand.vmem [shape: f32[1,96], index: 3, kind: input, shape index: {}]
  %s4 = inlined_call_operand.vmem [shape: f32[1,32], index: 4, kind: input, shape index: {}]
  %s5 = inlined_call_operand.vmem [shape: f32[32,32], index: 5, kind: input, shape index: {}]
  %s6 = inlined_call_operand.vmem [shape: f32[1,32], index: 6, kind: input, shape index: {}]
  %s7 = inlined_call_operand.vmem [shape: f32[32,4], index: 7, kind: input, shape index: {}]
  %s8 = inlined_call_operand.vmem [shape: f32[1,4], index: 8, kind: input, shape index: {}]
  %s9 = inlined_call_operand.hbm [shape: f32[2,4], index: 9, kind: output, shape index: {}]
  %s10 = sld [smem:[#allocation0]]
  $region46: #{gru_miner_forward.1} parent=0
    _
  %s12 = ssub.s32 1, %s10
  %s13 = scalar_select 0, %s12, %s10
  $region1: #{gru_miner_forward.1} parent=0
    #allocation3 [shape = 'u8[1024]{0}', space=vmem, size = 0x400, scoped, tag = 'output window, operand 0, single buffered']
    #allocation4 [shape = 's32[1]{0}', space=sflag, size = 0x4, scoped, tag = 'scoped memory for gru_miner_forward.1']
    %14 = vsyncpa [#allocation4], 0
    // Predicated region
    $region2: #{gru_miner_forward.1} parent=1 // pred_check
      _
    $region3: #{gru_miner_forward.1} parent=1 // pred_check_branch
      %16 = sbr.rel (0) target = $region5
    $region4: #{gru_miner_forward.1} parent=1 // pred_region
      _
    $region5: #{gru_miner_forward.1} parent=1 // pred_fallthru
      _
    // Predicated region
    $region6: #{gru_miner_forward.1} parent=1 // pred_check
      _
    $region7: #{gru_miner_forward.1} parent=1 // pred_check_branch
      %18 = sbr.rel (0) target = $region9
    $region8: #{gru_miner_forward.1} parent=1 // pred_region
      _
    $region9: #{gru_miner_forward.1} parent=1 // pred_fallthru
      _
    // Predicated region
    $region10: #{gru_miner_forward.1} parent=1 // pred_check
      _
    $region11: #{gru_miner_forward.1} parent=1 // pred_check_branch
      %20 = sbr.rel (0) target = $region13
    $region12: #{gru_miner_forward.1} parent=1 // pred_region
      _
    $region13: #{gru_miner_forward.1} parent=1 // pred_fallthru
      _
    // Predicated region
    $region14: #{gru_miner_forward.1} parent=1 // pred_check
      _
    $region15: #{gru_miner_forward.1} parent=1 // pred_check_branch
      %22 = sbr.rel (0) target = $region17
    $region16: #{gru_miner_forward.1} parent=1 // pred_region
      _
    $region17: #{gru_miner_forward.1} parent=1 // pred_fallthru
      _
    // Predicated region
    $region18: #{gru_miner_forward.1} parent=1 // pred_check
      _
    $region19: #{gru_miner_forward.1} parent=1 // pred_check_branch
      %24 = sbr.rel (0) target = $region21
    $region20: #{gru_miner_forward.1} parent=1 // pred_region
      _
    $region21: #{gru_miner_forward.1} parent=1 // pred_fallthru
      _
    // Predicated region
    $region22: #{gru_miner_forward.1} parent=1 // pred_check
      _
    $region23: #{gru_miner_forward.1} parent=1 // pred_check_branch
      %26 = sbr.rel (0) target = $region25
    $region24: #{gru_miner_forward.1} parent=1 // pred_region
      _
    $region25: #{gru_miner_forward.1} parent=1 // pred_fallthru
      _
    // Predicated region
    $region26: #{gru_miner_forward.1} parent=1 // pred_check
      _
    $region27: #{gru_miner_forward.1} parent=1 // pred_check_branch
      %28 = sbr.rel (0) target = $region29
    $region28: #{gru_miner_forward.1} parent=1 // pred_region
      _
    $region29: #{gru_miner_forward.1} parent=1 // pred_fallthru
      _
    // Predicated region
    $region30: #{gru_miner_forward.1} parent=1 // pred_check
      _
    $region31: #{gru_miner_forward.1} parent=1 // pred_check_branch
      %30 = sbr.rel (0) target = $region33
    $region32: #{gru_miner_forward.1} parent=1 // pred_region
      _
    $region33: #{gru_miner_forward.1} parent=1 // pred_fallthru
      _
    // Predicated region
    $region34: #{gru_miner_forward.1} parent=1 // pred_check
      _
    $region35: #{gru_miner_forward.1} parent=1 // pred_check_branch
      %32 = sbr.rel (0) target = $region37
    $region36: #{gru_miner_forward.1} parent=1 // pred_region
      _
    $region37: #{gru_miner_forward.1} parent=1 // pred_fallthru
      _
    %v33 = vld [vmem:[%s0] sm:$0xff]
    %v34 = vld [vmem:[%s0 + $0x8] sm:$0xff]
    %v35 = vld [vmem:[%s0 + $0x10] sm:$0xff]
    %v36 = vld [vmem:[%s0 + $0x18] sm:$0xff]
    %v37 = vld [vmem:[%s0 + $0x20] sm:$0xff]
    %v38 = vld [vmem:[%s0 + $0x28] sm:$0xff]
    %v39 = vld [vmem:[%s0 + $0x30] sm:$0xff]
    %v40 = vld [vmem:[%s0 + $0x38] sm:$0xff]
    %v41 = vld [vmem:[%s1] sm:$0xff]
    %v42 = vld [vmem:[%s1 + $0x8] sm:$0xff]
    %v43 = vld [vmem:[%s3] sm:$0x1]
    %v45 = vperm.slane %v43, 0
    %vm47 = vcmask 130048
    %v49 = vsel %vm47, %v33, 0
    %v52 = vsel %vm47, %v34, 0
    %v55 = vsel %vm47, %v35, 0
    %v58 = vsel %vm47, %v36, 0
    %v61 = vsel %vm47, %v37, 0
    %v64 = vsel %vm47, %v38, 0
    %v67 = vsel %vm47, %v39, 0
    %v70 = vsel %vm47, %v40, 0
    %72 = vmatpush.msra.mxu0 0.0
    %73 = vmatpush.msra.mxu0 0.0
    %74 = vmatpush.msra.mxu0 0.0
    %75 = vmatpush.msra.mxu0 0.0
    %76 = vmatpush.msra.mxu0 0.0
    %77 = vmatpush.msra.mxu0 0.0
    %78 = vmatpush.msra.mxu0 0.0
    %79 = vmatpush.msra.mxu0 0.0
    %80 = vmatpush.msra.mxu0 0.0
    %81 = vmatpush.msra.mxu0 0.0
    %82 = vmatpush.msra.mxu0 0.0
    %83 = vmatpush.msra.mxu0 0.0
    %84 = vmatpush.msra.mxu0 0.0
    %85 = vmatpush.msra.mxu0 0.0
    %86 = vmatpush.msra.mxu0 %v42
    %87 = vmatpush.msra.mxu0 %v41
    %88 = vmatmul.f32.gmra.mxu0 %v49
    %v89 = vpop.f32.mrf.mxu0
    %v90 = vadd.f32 %v45, %v89
    %91 = vmatmul.f32.gmra.mxu0 %v52
    %v92 = vpop.f32.mrf.mxu0
    %v93 = vadd.f32 %v45, %v92
    %94 = vmatmul.f32.gmra.mxu0 %v55
    %v95 = vpop.f32.mrf.mxu0
    %v96 = vadd.f32 %v45, %v95
    %97 = vmatmul.f32.gmra.mxu0 %v58
    %v98 = vpop.f32.mrf.mxu0
    %v99 = vadd.f32 %v45, %v98
    %100 = vmatmul.f32.gmra.mxu0 %v61
    %v101 = vpop.f32.mrf.mxu0
    %v102 = vadd.f32 %v45, %v101
    %103 = vmatmul.f32.gmra.mxu0 %v64
    %v104 = vpop.f32.mrf.mxu0
    %v105 = vadd.f32 %v45, %v104
    %106 = vmatmul.f32.gmra.mxu0 %v67
    %v107 = vpop.f32.mrf.mxu0
    %v108 = vadd.f32 %v45, %v107
    %109 = vmatmul.f32.gmra.mxu0 %v70
    %v110 = vpop.f32.mrf.mxu0
    %v111 = vadd.f32 %v45, %v110
    %112 = vdwg.mxu0
    %vm113 = vcmask 785408
    %114 = vst.msk [vmem:[#allocation2] sm:$0xff] %vm113, %v90
    %s115 = scalar_lea.vmem [#allocation2], 8
    %116 = vst.msk [vmem:[%s115] sm:$0xff] %vm113, %v93
    %s117 = scalar_lea.vmem [#allocation2], 16
    %118 = vst.msk [vmem:[%s117] sm:$0xff] %vm113, %v96
    %s119 = scalar_lea.vmem [#allocation2], 24
    %120 = vst.msk [vmem:[%s119] sm:$0xff] %vm113, %v99
    %s121 = scalar_lea.vmem [#allocation2], 32
    %122 = vst.msk [vmem:[%s121] sm:$0xff] %vm113, %v102
    %s123 = scalar_lea.vmem [#allocation2], 40
    %124 = vst.msk [vmem:[%s123] sm:$0xff] %vm113, %v105
    %s125 = scalar_lea.vmem [#allocation2], 48
    %126 = vst.msk [vmem:[%s125] sm:$0xff] %vm113, %v108
    %s127 = scalar_lea.vmem [#allocation2], 56
    %128 = vst.msk [vmem:[%s127] sm:$0xff] %vm113, %v111
    %v129 = vld [vmem:[%s2] sm:$0xff]
    %v130 = vld [vmem:[%s2 + $0x8] sm:$0xff]
    %v131 = vld [vmem:[%s2 + $0x10] sm:$0xff]
    %v132 = vld [vmem:[%s2 + $0x18] sm:$0xff]
    %v133 = vld [vmem:[%s4] sm:$0x1]
    %v135 = vperm.slane %v133, 0
    %vm136 = vcmask 261120
    %v138 = vsel %vm136, 0.0, 0
    %140 = vmatpush.msra.mxu0 0.0
    %141 = vmatpush.msra.mxu0 0.0
    %142 = vmatpush.msra.mxu0 0.0
    %143 = vmatpush.msra.mxu0 0.0
    %144 = vmatpush.msra.mxu0 0.0
    %145 = vmatpush.msra.mxu0 0.0
    %146 = vmatpush.msra.mxu0 0.0
    %147 = vmatpush.msra.mxu0 0.0
    %148 = vmatpush.msra.mxu0 0.0
    %149 = vmatpush.msra.mxu0 0.0
    %150 = vmatpush.msra.mxu0 0.0
    %151 = vmatpush.msra.mxu0 0.0
    %152 = vmatpush.msra.mxu0 %v132
    %153 = vmatpush.msra.mxu0 %v131
    %154 = vmatpush.msra.mxu0 %v130
    %155 = vmatpush.msra.mxu0 %v129
    %156 = vmatmul.f32.gmra.mxu0 %v138
    %v157 = vpop.f32.mrf.mxu0
    %v158 = vadd.f32 0.0, %v157
    %159 = vdwg.mxu0
    %v160 = vld [vmem:[#allocation2] sm:$0xff]
    %v161 = vadd.f32 %v160, %v158
    %v162 = vxor.u32 %v161, 2147483648
    %v163 = vmul.f32 %v162, 1.442695
    %v164 = vpow.pop %v163
    %v165 = vadd.f32 %v164, 1.0
    %v166 = vrcp.pop %v165
    %v167 = vmul.f32 %v165, %v166
    %v168 = vsub.f32 1.0, %v167
    %v169 = vmul.f32 %v166, %v168
    %v170 = vadd.f32 %v166, %v169
    %vm171 = vweird.f32 %v165
    %vm172 = vweird.f32 %v166
    %vm173 = vmor %vm171, %vm172
    %v174 = vsel %vm173, %v166, %v170
    %v175 = vand.u32 2147483647, %v165
    %vm176 = vcmp.eq.f32.partialorder %v175, 8.507059e+37
    %v177 = vand.u32 %v165, 2147483648
    %v178 = vor.u32 1.1754944e-38, %v177
    %v179 = vsel %vm176, %v178, %v174
    %v180 = vmul.f32 1.0, %v179
    %181 = vrot.lane.b32.xlu0 %v135, 64
    %v182 = vpop.permute.xlu0 %181
    %v184 = vadd.f32 %v158, %v182
    %186 = vrot.lane.b32.xlu0 %v184, 64
    %v187 = vpop.permute.xlu0 %186
    %v189 = vmul.f32 %v180, %v187
    %191 = vrot.lane.b32.xlu0 %v189, 64
    %v192 = vpop.permute.xlu0 %191
    %v194 = vadd.f32 %v160, %v192
    %v195 = vtanh.pop %v194
    %v196 = vsub.f32 1.0, %v180
    %198 = vrot.lane.b32.xlu0 %v195, 96
    %v199 = vpop.permute.xlu0 %198
    %v201 = vmul.f32 %v196, %v199
    %v202 = vmul.f32 %v180, 0.0
    %v203 = vadd.f32 %v201, %v202
    %205 = vrot.lane.b32.xlu0 %v203, 96
    %v206 = vpop.permute.xlu0 %205
    %v207 = vsel %vm136, %v206, 0
    %209 = vmatpush.msra.mxu0 0.0
    %210 = vmatpush.msra.mxu0 0.0
    %211 = vmatpush.msra.mxu0 0.0
    %212 = vmatpush.msra.mxu0 0.0
    %213 = vmatpush.msra.mxu0 0.0
    %214 = vmatpush.msra.mxu0 0.0
    %215 = vmatpush.msra.mxu0 0.0
    %216 = vmatpush.msra.mxu0 0.0
    %217 = vmatpush.msra.mxu0 0.0
    %218 = vmatpush.msra.mxu0 0.0
    %219 = vmatpush.msra.mxu0 0.0
    %220 = vmatpush.msra.mxu0 0.0
    %221 = vmatpush.msra.mxu0 %v132
    %222 = vmatpush.msra.mxu0 %v131
    %223 = vmatpush.msra.mxu0 %v130
    %224 = vmatpush.msra.mxu0 %v129
    %225 = vmatmul.f32.gmra.mxu0 %v207
    %v226 = vpop.f32.mrf.mxu0
    %v227 = vadd.f32 0.0, %v226
    %228 = vdwg.mxu0
    %v229 = vld [vmem:[%s115] sm:$0xff]
    %v230 = vadd.f32 %v229, %v227
    %v231 = vxor.u32 %v230, 2147483648
    %v232 = vmul.f32 %v231, 1.442695
    %v233 = vpow.pop %v232
    %v234 = vadd.f32 %v233, 1.0
    %v235 = vrcp.pop %v234
    %v236 = vmul.f32 %v234, %v235
    %v237 = vsub.f32 1.0, %v236
    %v238 = vmul.f32 %v235, %v237
    %v239 = vadd.f32 %v235, %v238
    %vm240 = vweird.f32 %v234
    %vm241 = vweird.f32 %v235
    %vm242 = vmor %vm240, %vm241
    %v243 = vsel %vm242, %v235, %v239
    %v244 = vand.u32 2147483647, %v234
    %vm245 = vcmp.eq.f32.partialorder %v244, 8.507059e+37
    %v246 = vand.u32 %v234, 2147483648
    %v247 = vor.u32 1.1754944e-38, %v246
    %v248 = vsel %vm245, %v247, %v243
    %v249 = vmul.f32 1.0, %v248
    %v250 = vadd.f32 %v227, %v182
    %252 = vrot.lane.b32.xlu0 %v250, 64
    %v253 = vpop.permute.xlu0 %252
    %v255 = vmul.f32 %v249, %v253
    %257 = vrot.lane.b32.xlu0 %v255, 64
    %v258 = vpop.permute.xlu0 %257
    %v260 = vadd.f32 %v229, %v258
    %v261 = vtanh.pop %v260
    %v262 = vsub.f32 1.0, %v249
    %264 = vrot.lane.b32.xlu0 %v261, 96
    %v265 = vpop.permute.xlu0 %264
    %v267 = vmul.f32 %v262, %v265
    %v268 = vmul.f32 %v249, %v203
    %v269 = vadd.f32 %v267, %v268
    %271 = vrot.lane.b32.xlu0 %v269, 96
    %v272 = vpop.permute.xlu0 %271
    %v273 = vsel %vm136, %v272, 0
    %275 = vmatpush.msra.mxu0 0.0
    %276 = vmatpush.msra.mxu0 0.0
    %277 = vmatpush.msra.mxu0 0.0
    %278 = vmatpush.msra.mxu0 0.0
    %279 = vmatpush.msra.mxu0 0.0
    %280 = vmatpush.msra.mxu0 0.0
    %281 = vmatpush.msra.mxu0 0.0
    %282 = vmatpush.msra.mxu0 0.0
    %283 = vmatpush.msra.mxu0 0.0
    %284 = vmatpush.msra.mxu0 0.0
    %285 = vmatpush.msra.mxu0 0.0
    %286 = vmatpush.msra.mxu0 0.0
    %287 = vmatpush.msra.mxu0 %v132
    %288 = vmatpush.msra.mxu0 %v131
    %289 = vmatpush.msra.mxu0 %v130
    %290 = vmatpush.msra.mxu0 %v129
    %291 = vmatmul.f32.gmra.mxu0 %v273
    %v292 = vpop.f32.mrf.mxu0
    %v293 = vadd.f32 0.0, %v292
    %294 = vdwg.mxu0
    %v295 = vld [vmem:[%s117] sm:$0xff]
    %v296 = vadd.f32 %v295, %v293
    %v297 = vxor.u32 %v296, 2147483648
    %v298 = vmul.f32 %v297, 1.442695
    %v299 = vpow.pop %v298
    %v300 = vadd.f32 %v299, 1.0
    %v301 = vrcp.pop %v300
    %v302 = vmul.f32 %v300, %v301
    %v303 = vsub.f32 1.0, %v302
    %v304 = vmul.f32 %v301, %v303
    %v305 = vadd.f32 %v301, %v304
    %vm306 = vweird.f32 %v300
    %vm307 = vweird.f32 %v301
    %vm308 = vmor %vm306, %vm307
    %v309 = vsel %vm308, %v301, %v305
    %v310 = vand.u32 2147483647, %v300
    %vm311 = vcmp.eq.f32.partialorder %v310, 8.507059e+37
    %v312 = vand.u32 %v300, 2147483648
    %v313 = vor.u32 1.1754944e-38, %v312
    %v314 = vsel %vm311, %v313, %v309
    %v315 = vmul.f32 1.0, %v314
    %v316 = vadd.f32 %v293, %v182
    %318 = vrot.lane.b32.xlu0 %v316, 64
    %v319 = vpop.permute.xlu0 %318
    %v321 = vmul.f32 %v315, %v319
    %323 = vrot.lane.b32.xlu0 %v321, 64
    %v324 = vpop.permute.xlu0 %323
    %v326 = vadd.f32 %v295, %v324
    %v327 = vtanh.pop %v326
    %v328 = vsub.f32 1.0, %v315
    %330 = vrot.lane.b32.xlu0 %v327, 96
    %v331 = vpop.permute.xlu0 %330
    %v333 = vmul.f32 %v328, %v331
    %v334 = vmul.f32 %v315, %v269
    %v335 = vadd.f32 %v333, %v334
    %337 = vrot.lane.b32.xlu0 %v335, 96
    %v338 = vpop.permute.xlu0 %337
    %v339 = vsel %vm136, %v338, 0
    %341 = vmatpush.msra.mxu0 0.0
    %342 = vmatpush.msra.mxu0 0.0
    %343 = vmatpush.msra.mxu0 0.0
    %344 = vmatpush.msra.mxu0 0.0
    %345 = vmatpush.msra.mxu0 0.0
    %346 = vmatpush.msra.mxu0 0.0
    %347 = vmatpush.msra.mxu0 0.0
    %348 = vmatpush.msra.mxu0 0.0
    %349 = vmatpush.msra.mxu0 0.0
    %350 = vmatpush.msra.mxu0 0.0
    %351 = vmatpush.msra.mxu0 0.0
    %352 = vmatpush.msra.mxu0 0.0
    %353 = vmatpush.msra.mxu0 %v132
    %354 = vmatpush.msra.mxu0 %v131
    %355 = vmatpush.msra.mxu0 %v130
    %356 = vmatpush.msra.mxu0 %v129
    %357 = vmatmul.f32.gmra.mxu0 %v339
    %v358 = vpop.f32.mrf.mxu0
    %v359 = vadd.f32 0.0, %v358
    %360 = vdwg.mxu0
    %v361 = vld [vmem:[%s119] sm:$0xff]
    %v362 = vadd.f32 %v361, %v359
    %v363 = vxor.u32 %v362, 2147483648
    %v364 = vmul.f32 %v363, 1.442695
    %v365 = vpow.pop %v364
    %v366 = vadd.f32 %v365, 1.0
    %v367 = vrcp.pop %v366
    %v368 = vmul.f32 %v366, %v367
    %v369 = vsub.f32 1.0, %v368
    %v370 = vmul.f32 %v367, %v369
    %v371 = vadd.f32 %v367, %v370
    %vm372 = vweird.f32 %v366
    %vm373 = vweird.f32 %v367
    %vm374 = vmor %vm372, %vm373
    %v375 = vsel %vm374, %v367, %v371
    %v376 = vand.u32 2147483647, %v366
    %vm377 = vcmp.eq.f32.partialorder %v376, 8.507059e+37
    %v378 = vand.u32 %v366, 2147483648
    %v379 = vor.u32 1.1754944e-38, %v378
    %v380 = vsel %vm377, %v379, %v375
    %v381 = vmul.f32 1.0, %v380
    %v382 = vadd.f32 %v359, %v182
    %384 = vrot.lane.b32.xlu0 %v382, 64
    %v385 = vpop.permute.xlu0 %384
    %v387 = vmul.f32 %v381, %v385
    %389 = vrot.lane.b32.xlu0 %v387, 64
    %v390 = vpop.permute.xlu0 %389
    %v392 = vadd.f32 %v361, %v390
    %v393 = vtanh.pop %v392
    %v394 = vsub.f32 1.0, %v381
    %396 = vrot.lane.b32.xlu0 %v393, 96
    %v397 = vpop.permute.xlu0 %396
    %v399 = vmul.f32 %v394, %v397
    %v400 = vmul.f32 %v381, %v335
    %v401 = vadd.f32 %v399, %v400
    %403 = vrot.lane.b32.xlu0 %v401, 96
    %v404 = vpop.permute.xlu0 %403
    %v405 = vsel %vm136, %v404, 0
    %407 = vmatpush.msra.mxu0 0.0
    %408 = vmatpush.msra.mxu0 0.0
    %409 = vmatpush.msra.mxu0 0.0
    %410 = vmatpush.msra.mxu0 0.0
    %411 = vmatpush.msra.mxu0 0.0
    %412 = vmatpush.msra.mxu0 0.0
    %413 = vmatpush.msra.mxu0 0.0
    %414 = vmatpush.msra.mxu0 0.0
    %415 = vmatpush.msra.mxu0 0.0
    %416 = vmatpush.msra.mxu0 0.0
    %417 = vmatpush.msra.mxu0 0.0
    %418 = vmatpush.msra.mxu0 0.0
    %419 = vmatpush.msra.mxu0 %v132
    %420 = vmatpush.msra.mxu0 %v131
    %421 = vmatpush.msra.mxu0 %v130
    %422 = vmatpush.msra.mxu0 %v129
    %423 = vmatmul.f32.gmra.mxu0 %v405
    %v424 = vpop.f32.mrf.mxu0
    %v425 = vadd.f32 0.0, %v424
    %426 = vdwg.mxu0
    %v427 = vld [vmem:[%s121] sm:$0xff]
    %v428 = vadd.f32 %v427, %v425
    %v429 = vxor.u32 %v428, 2147483648
    %v430 = vmul.f32 %v429, 1.442695
    %v431 = vpow.pop %v430
    %v432 = vadd.f32 %v431, 1.0
    %v433 = vrcp.pop %v432
    %v434 = vmul.f32 %v432, %v433
    %v435 = vsub.f32 1.0, %v434
    %v436 = vmul.f32 %v433, %v435
    %v437 = vadd.f32 %v433, %v436
    %vm438 = vweird.f32 %v432
    %vm439 = vweird.f32 %v433
    %vm440 = vmor %vm438, %vm439
    %v441 = vsel %vm440, %v433, %v437
    %v442 = vand.u32 2147483647, %v432
    %vm443 = vcmp.eq.f32.partialorder %v442, 8.507059e+37
    %v444 = vand.u32 %v432, 2147483648
    %v445 = vor.u32 1.1754944e-38, %v444
    %v446 = vsel %vm443, %v445, %v441
    %v447 = vmul.f32 1.0, %v446
    %v448 = vadd.f32 %v425, %v182
    %450 = vrot.lane.b32.xlu0 %v448, 64
    %v451 = vpop.permute.xlu0 %450
    %v453 = vmul.f32 %v447, %v451
    %455 = vrot.lane.b32.xlu0 %v453, 64
    %v456 = vpop.permute.xlu0 %455
    %v458 = vadd.f32 %v427, %v456
    %v459 = vtanh.pop %v458
    %v460 = vsub.f32 1.0, %v447
    %462 = vrot.lane.b32.xlu0 %v459, 96
    %v463 = vpop.permute.xlu0 %462
    %v465 = vmul.f32 %v460, %v463
    %v466 = vmul.f32 %v447, %v401
    %v467 = vadd.f32 %v465, %v466
    %469 = vrot.lane.b32.xlu0 %v467, 96
    %v470 = vpop.permute.xlu0 %469
    %v471 = vsel %vm136, %v470, 0
    %473 = vmatpush.msra.mxu0 0.0
    %474 = vmatpush.msra.mxu0 0.0
    %475 = vmatpush.msra.mxu0 0.0
    %476 = vmatpush.msra.mxu0 0.0
    %477 = vmatpush.msra.mxu0 0.0
    %478 = vmatpush.msra.mxu0 0.0
    %479 = vmatpush.msra.mxu0 0.0
    %480 = vmatpush.msra.mxu0 0.0
    %481 = vmatpush.msra.mxu0 0.0
    %482 = vmatpush.msra.mxu0 0.0
    %483 = vmatpush.msra.mxu0 0.0
    %484 = vmatpush.msra.mxu0 0.0
    %485 = vmatpush.msra.mxu0 %v132
    %486 = vmatpush.msra.mxu0 %v131
    %487 = vmatpush.msra.mxu0 %v130
    %488 = vmatpush.msra.mxu0 %v129
    %489 = vmatmul.f32.gmra.mxu0 %v471
    %v490 = vpop.f32.mrf.mxu0
    %v491 = vadd.f32 0.0, %v490
    %492 = vdwg.mxu0
    %v493 = vld [vmem:[%s123] sm:$0xff]
    %v494 = vadd.f32 %v493, %v491
    %v495 = vxor.u32 %v494, 2147483648
    %v496 = vmul.f32 %v495, 1.442695
    %v497 = vpow.pop %v496
    %v498 = vadd.f32 %v497, 1.0
    %v499 = vrcp.pop %v498
    %v500 = vmul.f32 %v498, %v499
    %v501 = vsub.f32 1.0, %v500
    %v502 = vmul.f32 %v499, %v501
    %v503 = vadd.f32 %v499, %v502
    %vm504 = vweird.f32 %v498
    %vm505 = vweird.f32 %v499
    %vm506 = vmor %vm504, %vm505
    %v507 = vsel %vm506, %v499, %v503
    %v508 = vand.u32 2147483647, %v498
    %vm509 = vcmp.eq.f32.partialorder %v508, 8.507059e+37
    %v510 = vand.u32 %v498, 2147483648
    %v511 = vor.u32 1.1754944e-38, %v510
    %v512 = vsel %vm509, %v511, %v507
    %v513 = vmul.f32 1.0, %v512
    %v514 = vadd.f32 %v491, %v182
    %516 = vrot.lane.b32.xlu0 %v514, 64
    %v517 = vpop.permute.xlu0 %516
    %v519 = vmul.f32 %v513, %v517
    %521 = vrot.lane.b32.xlu0 %v519, 64
    %v522 = vpop.permute.xlu0 %521
    %v524 = vadd.f32 %v493, %v522
    %v525 = vtanh.pop %v524
    %v526 = vsub.f32 1.0, %v513
    %528 = vrot.lane.b32.xlu0 %v525, 96
    %v529 = vpop.permute.xlu0 %528
    %v531 = vmul.f32 %v526, %v529
    %v532 = vmul.f32 %v513, %v467
    %v533 = vadd.f32 %v531, %v532
    %535 = vrot.lane.b32.xlu0 %v533, 96
    %v536 = vpop.permute.xlu0 %535
    %v537 = vsel %vm136, %v536, 0
    %539 = vmatpush.msra.mxu0 0.0
    %540 = vmatpush.msra.mxu0 0.0
    %541 = vmatpush.msra.mxu0 0.0
    %542 = vmatpush.msra.mxu0 0.0
    %543 = vmatpush.msra.mxu0 0.0
    %544 = vmatpush.msra.mxu0 0.0
    %545 = vmatpush.msra.mxu0 0.0
    %546 = vmatpush.msra.mxu0 0.0
    %547 = vmatpush.msra.mxu0 0.0
    %548 = vmatpush.msra.mxu0 0.0
    %549 = vmatpush.msra.mxu0 0.0
    %550 = vmatpush.msra.mxu0 0.0
    %551 = vmatpush.msra.mxu0 %v132
    %552 = vmatpush.msra.mxu0 %v131
    %553 = vmatpush.msra.mxu0 %v130
    %554 = vmatpush.msra.mxu0 %v129
    %555 = vmatmul.f32.gmra.mxu0 %v537
    %v556 = vpop.f32.mrf.mxu0
    %v557 = vadd.f32 0.0, %v556
    %558 = vdwg.mxu0
    %v559 = vld [vmem:[%s125] sm:$0xff]
    %v560 = vadd.f32 %v559, %v557
    %v561 = vxor.u32 %v560, 2147483648
    %v562 = vmul.f32 %v561, 1.442695
    %v563 = vpow.pop %v562
    %v564 = vadd.f32 %v563, 1.0
    %v565 = vrcp.pop %v564
    %v566 = vmul.f32 %v564, %v565
    %v567 = vsub.f32 1.0, %v566
    %v568 = vmul.f32 %v565, %v567
    %v569 = vadd.f32 %v565, %v568
    %vm570 = vweird.f32 %v564
    %vm571 = vweird.f32 %v565
    %vm572 = vmor %vm570, %vm571
    %v573 = vsel %vm572, %v565, %v569
    %v574 = vand.u32 2147483647, %v564
    %vm575 = vcmp.eq.f32.partialorder %v574, 8.507059e+37
    %v576 = vand.u32 %v564, 2147483648
    %v577 = vor.u32 1.1754944e-38, %v576
    %v578 = vsel %vm575, %v577, %v573
    %v579 = vmul.f32 1.0, %v578
    %v580 = vadd.f32 %v557, %v182
    %582 = vrot.lane.b32.xlu0 %v580, 64
    %v583 = vpop.permute.xlu0 %582
    %v585 = vmul.f32 %v579, %v583
    %587 = vrot.lane.b32.xlu0 %v585, 64
    %v588 = vpop.permute.xlu0 %587
    %v590 = vadd.f32 %v559, %v588
    %v591 = vtanh.pop %v590
    %v592 = vsub.f32 1.0, %v579
    %594 = vrot.lane.b32.xlu0 %v591, 96
    %v595 = vpop.permute.xlu0 %594
    %v597 = vmul.f32 %v592, %v595
    %v598 = vmul.f32 %v579, %v533
    %v599 = vadd.f32 %v597, %v598
    %601 = vrot.lane.b32.xlu0 %v599, 96
    %v602 = vpop.permute.xlu0 %601
    %v603 = vsel %vm136, %v602, 0
    %605 = vmatpush.msra.mxu0 0.0
    %606 = vmatpush.msra.mxu0 0.0
    %607 = vmatpush.msra.mxu0 0.0
    %608 = vmatpush.msra.mxu0 0.0
    %609 = vmatpush.msra.mxu0 0.0
    %610 = vmatpush.msra.mxu0 0.0
    %611 = vmatpush.msra.mxu0 0.0
    %612 = vmatpush.msra.mxu0 0.0
    %613 = vmatpush.msra.mxu0 0.0
    %614 = vmatpush.msra.mxu0 0.0
    %615 = vmatpush.msra.mxu0 0.0
    %616 = vmatpush.msra.mxu0 0.0
    %617 = vmatpush.msra.mxu0 %v132
    %618 = vmatpush.msra.mxu0 %v131
    %619 = vmatpush.msra.mxu0 %v130
    %620 = vmatpush.msra.mxu0 %v129
    %621 = vmatmul.f32.gmra.mxu0 %v603
    %v622 = vpop.f32.mrf.mxu0
    %v623 = vadd.f32 0.0, %v622
    %624 = vdwg.mxu0
    %v625 = vld [vmem:[%s127] sm:$0xff]
    %v626 = vadd.f32 %v625, %v623
    %v627 = vxor.u32 %v626, 2147483648
    %v628 = vmul.f32 %v627, 1.442695
    %v629 = vpow.pop %v628
    %v630 = vadd.f32 %v629, 1.0
    %v631 = vrcp.pop %v630
    %v632 = vmul.f32 %v630, %v631
    %v633 = vsub.f32 1.0, %v632
    %v634 = vmul.f32 %v631, %v633
    %v635 = vadd.f32 %v631, %v634
    %vm636 = vweird.f32 %v630
    %vm637 = vweird.f32 %v631
    %vm638 = vmor %vm636, %vm637
    %v639 = vsel %vm638, %v631, %v635
    %v640 = vand.u32 2147483647, %v630
    %vm641 = vcmp.eq.f32.partialorder %v640, 8.507059e+37
    %v642 = vand.u32 %v630, 2147483648
    %v643 = vor.u32 1.1754944e-38, %v642
    %v644 = vsel %vm641, %v643, %v639
    %v645 = vmul.f32 1.0, %v644
    %v646 = vadd.f32 %v623, %v182
    %648 = vrot.lane.b32.xlu0 %v646, 64
    %v649 = vpop.permute.xlu0 %648
    %v651 = vmul.f32 %v645, %v649
    %653 = vrot.lane.b32.xlu0 %v651, 64
    %v654 = vpop.permute.xlu0 %653
    %v656 = vadd.f32 %v625, %v654
    %v657 = vtanh.pop %v656
    %v658 = vsub.f32 1.0, %v645
    %660 = vrot.lane.b32.xlu0 %v657, 96
    %v661 = vpop.permute.xlu0 %660
    %v663 = vmul.f32 %v658, %v661
    %v664 = vmul.f32 %v645, %v599
    %v665 = vadd.f32 %v663, %v664
    %v666 = vld [vmem:[%s5] sm:$0xff]
    %v667 = vld [vmem:[%s5 + $0x8] sm:$0xff]
    %v668 = vld [vmem:[%s5 + $0x10] sm:$0xff]
    %v669 = vld [vmem:[%s5 + $0x18] sm:$0xff]
    %v670 = vld [vmem:[%s6] sm:$0x1]
    %v672 = vperm.slane %v670, 0
    %675 = vrot.lane.b32.xlu0 %v665, 96
    %v676 = vpop.permute.xlu0 %675
    %v677 = vsel %vm136, %v676, 0
    %679 = vmatpush.msra.mxu0 0.0
    %680 = vmatpush.msra.mxu0 0.0
    %681 = vmatpush.msra.mxu0 0.0
    %682 = vmatpush.msra.mxu0 0.0
    %683 = vmatpush.msra.mxu0 0.0
    %684 = vmatpush.msra.mxu0 0.0
    %685 = vmatpush.msra.mxu0 0.0
    %686 = vmatpush.msra.mxu0 0.0
    %687 = vmatpush.msra.mxu0 0.0
    %688 = vmatpush.msra.mxu0 0.0
    %689 = vmatpush.msra.mxu0 0.0
    %690 = vmatpush.msra.mxu0 0.0
    %691 = vmatpush.msra.mxu0 %v669
    %692 = vmatpush.msra.mxu0 %v668
    %693 = vmatpush.msra.mxu0 %v667
    %694 = vmatpush.msra.mxu0 %v666
    %695 = vmatmul.f32.gmra.mxu0 %v677
    %v696 = vpop.f32.mrf.mxu0
    %v697 = vadd.f32 %v672, %v696
    %698 = vdwg.mxu0
    %v699 = vtanh.pop %v697
    %v700 = vld [vmem:[%s7] sm:$0xff]
    %v701 = vld [vmem:[%s7 + $0x8] sm:$0xff]
    %v702 = vld [vmem:[%s7 + $0x10] sm:$0xff]
    %v703 = vld [vmem:[%s7 + $0x18] sm:$0xff]
    %v704 = vld [vmem:[%s8] sm:$0x1]
    %v706 = vperm.slane %v704, 0
    %v709 = vsel %vm136, %v699, 0
    %711 = vmatpush.msra.mxu0 0.0
    %712 = vmatpush.msra.mxu0 0.0
    %713 = vmatpush.msra.mxu0 0.0
    %714 = vmatpush.msra.mxu0 0.0
    %715 = vmatpush.msra.mxu0 0.0
    %716 = vmatpush.msra.mxu0 0.0
    %717 = vmatpush.msra.mxu0 0.0
    %718 = vmatpush.msra.mxu0 0.0
    %719 = vmatpush.msra.mxu0 0.0
    %720 = vmatpush.msra.mxu0 0.0
    %721 = vmatpush.msra.mxu0 0.0
    %722 = vmatpush.msra.mxu0 0.0
    %723 = vmatpush.msra.mxu0 %v703
    %724 = vmatpush.msra.mxu0 %v702
    %725 = vmatpush.msra.mxu0 %v701
    %726 = vmatpush.msra.mxu0 %v700
    %727 = vmatmul.f32.gmra.mxu0 %v709
    %v728 = vpop.f32.mrf.mxu0
    %v729 = vadd.f32 %v706, %v728
    %730 = vdwg.mxu0
    %vm731 = vcmask 25600
    %732 = vst.msk [vmem:[#allocation3] sm:$0x3] %vm731, %v729
    // Predicated region
    $region38: #{gru_miner_forward.1} parent=1 // pred_check
      _
    $region39: #{gru_miner_forward.1} parent=1 // pred_check_branch
      %734 = sbr.rel (0) target = $region41
    $region40: #{gru_miner_forward.1} parent=1 // pred_region
      %736 = vsyncadd [#allocation4], 0
      %s738 = sshll.u32 [#allocation3], 4
      %s739 = int_to_ptr.vmem [resolvable:$true] %s738
      %s740 = sshll.u32 %s9, 4
      %s741 = int_to_ptr.hbm [resolvable:$true] %s740
      %743 = dma.vmem_to_hbm [thread:$0]  %s739, 32, %s741, [#allocation4]
    $region41: #{gru_miner_forward.1} parent=1 // pred_fallthru
      _
    // Predicated region
    $region42: #{gru_miner_forward.1} parent=1 // pred_check
      _
    $region43: #{gru_miner_forward.1} parent=1 // pred_check_branch
      %745 = sbr.rel (0) target = $region45
    $region44: #{gru_miner_forward.1} parent=1 // pred_region
      %747 = dma.done [#allocation4], 32
    $region45: #{gru_miner_forward.1} parent=1 // pred_fallthru
      _
    %748 = vsyncpa [#allocation4], 1

</llo_original>
